<compile_context>
chip_gen: v7x
topology: tpu7x:2x2x1
jax: 0.10.0
libtpu: 0.0.40
codegen_flags: <defaults>
</compile_context>

<pallas_src>
import functools
import math

import jax
import jax.numpy as jnp
from jax.experimental import pallas as pl
from jax.experimental.pallas import tpu as pltpu


# Target tile sizes (sweepable). tm aligns to the sublane minimum of the dtype,
# tn/tk align to 128 lanes (and are multiples of 256 to keep the v6e/v7x MXU full
# when the problem is large enough).
_TM_TARGET = 256
_TN_TARGET = 512
_TK_TARGET = 512


def _round_up(v, m):
    return ((v + m - 1) // m) * m


def _sublane_multiple(dtype):
    # Minimum second-to-last-dim tile per dtype (packing along sublanes).
    return {4: 8, 2: 16, 1: 32}[jnp.dtype(dtype).itemsize]


def _pick_tile(dim, target, align):
    """Smallest aligned size covering `dim`, capped at `target` (a multiple of align)."""
    d = _round_up(max(dim, 1), align)
    return d if d <= target else target


def _linear_kernel(x_ref, wt_ref, b_ref, o_ref, acc_ref):
    # x_ref:  (tm, tk)  tile of padded x
    # wt_ref: (tk, tn)  tile of padded W^T
    # b_ref:  (1,  tn)  tile of padded bias
    # o_ref:  (tm, tn)  output tile (resident across the K axis)
    # acc_ref:(tm, tn)  float32 accumulator scratch
    k = pl.program_id(2)

    @pl.when(k == 0)
    def _init():
        acc_ref[...] = jnp.zeros_like(acc_ref)

    acc_ref[...] += jnp.dot(
        x_ref[...], wt_ref[...], preferred_element_type=jnp.float32
    )

    @pl.when(k == pl.num_programs(2) - 1)
    def _finalize():
        o_ref[...] = (acc_ref[...] + b_ref[...].astype(jnp.float32)).astype(o_ref.dtype)


def _prepare_params(weight, bias):
    """One-time (init) weight-stationary preprocessing: pad + transpose W, pad bias."""
    M, K = weight.shape
    tk = _pick_tile(K, _TK_TARGET, 128)  # 128 is a multiple of every sublane minimum
    tn = _pick_tile(M, _TN_TARGET, 128)
    Kp = _round_up(K, tk)
    Mp = _round_up(M, tn)
    wt_p = jnp.zeros((Kp, Mp), weight.dtype).at[:K, :M].set(weight.T)
    b_p = jnp.zeros((1, Mp), bias.dtype).at[0, :M].set(bias)
    return wt_p, b_p


@functools.partial(jax.jit, static_argnames=("out_features",))
def linear_forward(x, wt_p, b_p, *, out_features):
    """y = x @ W^T + b with W^T/b pre-padded. Exact torch.nn.Linear semantics for 2-D x."""
    N, K = x.shape
    Kp, Mp = wt_p.shape
    assert K <= Kp
    dtype = x.dtype

    tm = _pick_tile(N, _TM_TARGET, _sublane_multiple(dtype))
    tn = _pick_tile(Mp, _TN_TARGET, 128)
    tk = _pick_tile(Kp, _TK_TARGET, 128)
    Np = _round_up(N, tm)
    assert Mp % tn == 0 and Kp % tk == 0

    # Only x needs per-call padding (weights/bias were padded once at init).
    if (N, K) != (Np, Kp):
        x_p = jnp.zeros((Np, Kp), dtype).at[:N, :K].set(x)
    else:
        x_p = x

    grid = (Np // tm, Mp // tn, Kp // tk)
    itemsize = jnp.dtype(dtype).itemsize
    cost = pl.CostEstimate(
        flops=2 * Np * Kp * Mp,
        transcendentals=0,
        bytes_accessed=itemsize * (Np * Kp + Kp * Mp + Np * Mp + Mp),
    )

    out_p = pl.pallas_call(
        _linear_kernel,
        out_shape=jax.ShapeDtypeStruct((Np, Mp), dtype),
        grid_spec=pltpu.PrefetchScalarGridSpec(
            num_scalar_prefetch=0,
            grid=grid,
            in_specs=[
                pl.BlockSpec((tm, tk), lambda i, j, k: (i, k)),
                pl.BlockSpec((tk, tn), lambda i, j, k: (k, j)),
                pl.BlockSpec((1, tn), lambda i, j, k: (0, j)),
            ],
            out_specs=pl.BlockSpec((tm, tn), lambda i, j, k: (i, j)),
            scratch_shapes=[pltpu.VMEM((tm, tn), jnp.float32)],
        ),
        compiler_params=pltpu.CompilerParams(
            dimension_semantics=("parallel", "parallel", "arbitrary"),
            vmem_limit_bytes=48 * 1024 * 1024,  # > default scoped cap, < v7x 64 MiB physical
        ),
        cost_estimate=cost,
    )(x_p, wt_p, b_p)

    return out_p[:N, :out_features]


class LinearRegressionModelPallas:
    """JAX/Pallas mirror of the PyTorch LinearRegressionModel (single nn.Linear)."""

    def __init__(self, inputSize=1, outputSize=1, key=jax.random.PRNGKey(0),
                 dtype=jnp.float32):
        kw, kb = jax.random.split(key)
        bound = 1.0 / math.sqrt(inputSize)
        self.weight = jax.random.uniform(
            kw, (outputSize, inputSize), dtype, minval=-bound, maxval=bound
        )
        self.bias = jax.random.uniform(
            kb, (outputSize,), dtype, minval=-bound, maxval=bound
        )
        self.in_features = inputSize
        self.out_features = outputSize
        # Weight-stationary: pad + transpose once, reused by every forward call.
        self.wt_p, self.b_p = _prepare_params(self.weight, self.bias)

    def __call__(self, x):
        assert x.ndim == 2 and x.shape[1] == self.in_features
        return linear_forward(x, self.wt_p, self.b_p, out_features=self.out_features)


if __name__ == "__main__":
    key = jax.random.PRNGKey(0)
    k_m1, k_x1, k_m2, k_x2 = jax.random.split(key, 4)

    # Case 1: module defaults (inputSize=1, outputSize=1), small batch.
    model = LinearRegressionModelPallas(1, 1, key=k_m1)
    x = jax.random.normal(k_x1, (8, 1), jnp.float32)
    y = jax.block_until_ready(model(x))
    y_ref = x @ model.weight.T + model.bias
    assert y.shape == (8, 1)
    assert jnp.allclose(y, y_ref, atol=1e-5, rtol=1e-5)

    # Case 2: exercises padding, ragged dims, multiple K tiles and the
    # accumulator / gated-bias path (Kp=1024 -> 2 reduction steps).
    model2 = LinearRegressionModelPallas(600, 300, key=k_m2)
    x2 = jax.random.normal(k_x2, (100, 600), jnp.float32)
    y2 = jax.block_until_ready(model2(x2))
    y2_ref = x2 @ model2.weight.T + model2.bias
    assert y2.shape == (100, 300)
    assert jnp.allclose(y2, y2_ref, atol=1e-3, rtol=1e-3)

    print("KERNEL_OK")
</pallas_src>

<mosaic_0001>
module attributes {stable_mosaic.version = 11 : i64} {
  func.func @_linear_kernel(%arg0: i32, %arg1: i32, %arg2: i32, %arg3: memref<8x128xf32, #tpu.memory_space<vmem>>, %arg4: memref<128x128xf32, #tpu.memory_space<vmem>>, %arg5: memref<1x128xf32, #tpu.memory_space<vmem>>, %arg6: memref<8x128xf32, #tpu.memory_space<vmem>>, %arg7: memref<8x128xf32, #tpu.memory_space<vmem>>) attributes {dimension_semantics = [#tpu.dimension_semantics<parallel>, #tpu.dimension_semantics<parallel>, #tpu.dimension_semantics<arbitrary>], iteration_bounds = array<i64: 1, 1, 1>, scalar_prefetch = 0 : i64, scratch_operands = 1 : i64, tpu.core_type = #tpu.core_type<tc>, window_params = [{transform_indices = @transform_0, window_bounds = array<i64: 8, 128>}, {transform_indices = @transform_1, window_bounds = array<i64: 128, 128>}, {transform_indices = @transform_2, window_bounds = array<i64: 1, 128>}, {transform_indices = @transform_3, window_bounds = array<i64: 8, 128>}]} {
    %c0_i32 = arith.constant 0 : i32
    %0 = arith.cmpi eq, %arg2, %c0_i32 : i32
    %1 = arith.extui %0 : i1 to i32
    %c0_i32_0 = arith.constant 0 : i32
    %2 = arith.cmpi ne, %1, %c0_i32_0 : i32
    scf.if %2 {
      %cst_10 = arith.constant 0.000000e+00 : f32
      %12 = vector.broadcast %cst_10 : f32 to vector<8x128xf32>
      %c0_11 = arith.constant 0 : index
      %c0_12 = arith.constant 0 : index
      %13 = vector.load %arg7[%c0_11, %c0_12] : memref<8x128xf32, #tpu.memory_space<vmem>>, vector<8x128xf32>
      tpu.vector_store %arg7[%c0_11, %c0_12], %12 {strides = array<i32>} : memref<8x128xf32, #tpu.memory_space<vmem>>, vector<8x128xf32>,
    } else {
    }
    %c0 = arith.constant 0 : index
    %c0_1 = arith.constant 0 : index
    %3 = vector.load %arg7[%c0, %c0_1] : memref<8x128xf32, #tpu.memory_space<vmem>>, vector<8x128xf32>
    %c0_2 = arith.constant 0 : index
    %c0_3 = arith.constant 0 : index
    %4 = vector.load %arg3[%c0_2, %c0_3] : memref<8x128xf32, #tpu.memory_space<vmem>>, vector<8x128xf32>
    %c0_4 = arith.constant 0 : index
    %c0_5 = arith.constant 0 : index
    %5 = vector.load %arg4[%c0_4, %c0_5] : memref<128x128xf32, #tpu.memory_space<vmem>>, vector<128x128xf32>
    %cst = arith.constant dense<0.000000e+00> : vector<8x128xf32>
    %6 = tpu.matmul %4, %5, %cst {dimension_numbers = #tpu.dot_dimension_numbers<[1], [0], [0], [1], [0, 0, 1, 1], [], []>} : vector<8x128xf32>, vector<128x128xf32>, vector<8x128xf32> -> vector<8x128xf32>
    %7 = arith.addf %3, %6 : vector<8x128xf32>
    %c0_6 = arith.constant 0 : index
    %c0_7 = arith.constant 0 : index
    %8 = vector.load %arg7[%c0_6, %c0_7] : memref<8x128xf32, #tpu.memory_space<vmem>>, vector<8x128xf32>
    tpu.vector_store %arg7[%c0_6, %c0_7], %7 {strides = array<i32>} : memref<8x128xf32, #tpu.memory_space<vmem>>, vector<8x128xf32>,
    %c0_i32_8 = arith.constant 0 : i32
    %9 = arith.cmpi eq, %arg2, %c0_i32_8 : i32
    %10 = arith.extui %9 : i1 to i32
    %c0_i32_9 = arith.constant 0 : i32
    %11 = arith.cmpi ne, %10, %c0_i32_9 : i32
    scf.if %11 {
      %c0_10 = arith.constant 0 : index
      %c0_11 = arith.constant 0 : index
      %12 = vector.load %arg7[%c0_10, %c0_11] : memref<8x128xf32, #tpu.memory_space<vmem>>, vector<8x128xf32>
      %c0_12 = arith.constant 0 : index
      %c0_13 = arith.constant 0 : index
      %13 = vector.load %arg5[%c0_12, %c0_13] : memref<1x128xf32, #tpu.memory_space<vmem>>, vector<1x128xf32>
      %14 = vector.broadcast %13 : vector<1x128xf32> to vector<8x128xf32>
      %15 = arith.addf %12, %14 : vector<8x128xf32>
      %c0_14 = arith.constant 0 : index
      %c0_15 = arith.constant 0 : index
      %16 = vector.load %arg6[%c0_14, %c0_15] : memref<8x128xf32, #tpu.memory_space<vmem>>, vector<8x128xf32>
      tpu.vector_store %arg6[%c0_14, %c0_15], %15 {strides = array<i32>} : memref<8x128xf32, #tpu.memory_space<vmem>>, vector<8x128xf32>,
    } else {
    }
    return
  }
  func.func @transform_0(%arg0: i32, %arg1: i32, %arg2: i32) -> (i32, i32) {
    %c0_i32 = arith.constant 0 : i32
    return %arg0, %arg2 : i32, i32
  }
  func.func @transform_1(%arg0: i32, %arg1: i32, %arg2: i32) -> (i32, i32) {
    %c0_i32 = arith.constant 0 : i32
    return %arg2, %arg1 : i32, i32
  }
  func.func @transform_2(%arg0: i32, %arg1: i32, %arg2: i32) -> (i32, i32) {
    %c0_i32 = arith.constant 0 : i32
    %c0_i32_0 = arith.constant 0 : i32
    return %c0_i32, %arg1 : i32, i32
  }
  func.func @transform_3(%arg0: i32, %arg1: i32, %arg2: i32) -> (i32, i32) {
    %c0_i32 = arith.constant 0 : i32
    return %arg0, %arg1 : i32, i32
  }
}

</mosaic_0001>

<llo_original>
// kernel: linear_forward.1
$region0: #{linear_forward.1}
  #allocation0 [shape = 'u32[]', space=smem, size = 0x4, offset = 0x4, fixed_abs, tag = 'smem constant byte address 0x4 - core index']
  #allocation1 [shape = 'u32[144,128]{1,0:T(1,128)}', space=vmem, size = 0x12000, scoped, tag = 'internal scratch']
  #allocation2 [shape = 'f32[8,128]{1,0:T(8,128)}', space=vmem, size = 0x1000, scoped, tag = 'scratch operand']
  %s0 = inlined_call_operand.vmem [shape: f32[8,128], index: 0, kind: input, shape index: {}]
  %s1 = inlined_call_operand.hbm [shape: f32[128,128], index: 1, kind: input, shape index: {}]
  %s2 = inlined_call_operand.vmem [shape: f32[1,128], index: 2, kind: input, shape index: {}]
  %s3 = inlined_call_operand.vmem [shape: f32[8,128], index: 3, kind: output, shape index: {}]
  %s4 = sld [smem:[#allocation0]]
  $region34: #{linear_forward.1} parent=0
    _
  %s6 = ssub.s32 1, %s4
  %s7 = scalar_select 0, %s6, %s4
  $region1: #{linear_forward.1} parent=0
    #allocation3 [shape = 'u8[65536]{0}', space=vmem, size = 0x10000, scoped, tag = 'input window, operand 1, single buffered']
    #allocation4 [shape = 's32[1]{0}', space=sflag, size = 0x4, scoped, tag = 'scoped memory for linear_forward.1']
    %8 = vsyncpa [#allocation4], 0
    // Predicated region
    $region2: #{linear_forward.1} parent=1 // pred_check
      _
    $region3: #{linear_forward.1} parent=1 // pred_check_branch
      %10 = sbr.rel (0) target = $region5
    $region4: #{linear_forward.1} parent=1 // pred_region
      _
    $region5: #{linear_forward.1} parent=1 // pred_fallthru
      _
    // Predicated region
    $region6: #{linear_forward.1} parent=1 // pred_check
      _
    $region7: #{linear_forward.1} parent=1 // pred_check_branch
      %12 = sbr.rel (0) target = $region9
    $region8: #{linear_forward.1} parent=1 // pred_region
      %s14 = ssub.s32 2048, 2048
      %15 = vsyncadd [#allocation4], %s14
      %s16 = sshll.u32 [#allocation3], 4
      %s17 = int_to_ptr.vmem [resolvable:$true] %s16
      %22 = dma.hbm_to_vmem [thread:$0]  %s1, 2048, %s17, [#allocation4], 128, 128, 8
    $region9: #{linear_forward.1} parent=1 // pred_fallthru
      _
    // Predicated region
    $region10: #{linear_forward.1} parent=1 // pred_check
      _
    $region11: #{linear_forward.1} parent=1 // pred_check_branch
      %24 = sbr.rel (0) target = $region13
    $region12: #{linear_forward.1} parent=1 // pred_region
      _
    $region13: #{linear_forward.1} parent=1 // pred_fallthru
      _
    // Predicated region
    $region14: #{linear_forward.1} parent=1 // pred_check
      _
    $region15: #{linear_forward.1} parent=1 // pred_check_branch
      %26 = sbr.rel (0) target = $region17
    $region16: #{linear_forward.1} parent=1 // pred_region
      %27 = dma.done [#allocation4], 2048
    $region17: #{linear_forward.1} parent=1 // pred_fallthru
      _
    %p28 = scmp.eq.s32.totalorder 0, 0
    // Predicated region
    $region18: #{linear_forward.1} parent=1 // pred_check
      %p29 = pneg %p28
    $region19: #{linear_forward.1} parent=1 // pred_check_branch
      %31 = sbr.rel (%p29) target = $region21
    $region20: #{linear_forward.1} parent=1 // pred_region
      %32 = vst [vmem:[#allocation2] sm:$0xff] 0.0
    $region21: #{linear_forward.1} parent=1 // pred_fallthru
      _
    %v33 = vld [vmem:[#allocation2] sm:$0xff]
    %v34 = vld [vmem:[%s0] sm:$0xff]
    %v35 = vld [vmem:[#allocation3] sm:$0xff]
    %v36 = vld [vmem:[#allocation3 + $0x8] sm:$0xff]
    %v37 = vld [vmem:[#allocation3 + $0x10] sm:$0xff]
    %v38 = vld [vmem:[#allocation3 + $0x18] sm:$0xff]
    %v39 = vld [vmem:[#allocation3 + $0x20] sm:$0xff]
    %v40 = vld [vmem:[#allocation3 + $0x28] sm:$0xff]
    %v41 = vld [vmem:[#allocation3 + $0x30] sm:$0xff]
    %v42 = vld [vmem:[#allocation3 + $0x38] sm:$0xff]
    %v43 = vld [vmem:[#allocation3 + $0x40] sm:$0xff]
    %v44 = vld [vmem:[#allocation3 + $0x48] sm:$0xff]
    %v45 = vld [vmem:[#allocation3 + $0x50] sm:$0xff]
    %v46 = vld [vmem:[#allocation3 + $0x58] sm:$0xff]
    %v47 = vld [vmem:[#allocation3 + $0x60] sm:$0xff]
    %v48 = vld [vmem:[#allocation3 + $0x68] sm:$0xff]
    %v49 = vld [vmem:[#allocation3 + $0x70] sm:$0xff]
    %v50 = vld [vmem:[#allocation3 + $0x78] sm:$0xff]
    %51 = vmatprep.subr.mxu0 0.0
    %52 = vmatpush1.msra.mxu0 %v35
    %53 = vmatprep.subr.mxu0 0.0
    %54 = vmatpush1.msra.mxu0 %v36
    %55 = vmatprep.subr.mxu0 0.0
    %56 = vmatpush1.msra.mxu0 %v37
    %57 = vmatprep.subr.mxu0 0.0
    %58 = vmatpush1.msra.mxu0 %v38
    %59 = vmatprep.subr.mxu0 0.0
    %60 = vmatpush1.msra.mxu0 %v39
    %61 = vmatprep.subr.mxu0 0.0
    %62 = vmatpush1.msra.mxu0 %v40
    %63 = vmatprep.subr.mxu0 0.0
    %64 = vmatpush1.msra.mxu0 %v41
    %65 = vmatprep.subr.mxu0 0.0
    %66 = vmatpush1.msra.mxu0 %v42
    %67 = vmatprep.subr.mxu0 0.0
    %68 = vmatpush1.msra.mxu0 %v43
    %69 = vmatprep.subr.mxu0 0.0
    %70 = vmatpush1.msra.mxu0 %v44
    %71 = vmatprep.subr.mxu0 0.0
    %72 = vmatpush1.msra.mxu0 %v45
    %73 = vmatprep.subr.mxu0 0.0
    %74 = vmatpush1.msra.mxu0 %v46
    %75 = vmatprep.subr.mxu0 0.0
    %76 = vmatpush1.msra.mxu0 %v47
    %77 = vmatprep.subr.mxu0 0.0
    %78 = vmatpush1.msra.mxu0 %v48
    %79 = vmatprep.subr.mxu0 0.0
    %80 = vmatpush1.msra.mxu0 %v49
    %81 = vmatprep.subr.mxu0 0.0
    %82 = vmatpush1.msra.mxu0 %v50
    %83 = vmatprep.subr.mxu0 0.0
    %84 = vmatpush1.msra.mxu0 0.0
    %85 = vmatprep.subr.mxu0 0.0
    %86 = vmatpush1.msra.mxu0 0.0
    %87 = vmatprep.subr.mxu0 0.0
    %88 = vmatpush1.msra.mxu0 0.0
    %89 = vmatprep.subr.mxu0 0.0
    %90 = vmatpush1.msra.mxu0 0.0
    %91 = vmatprep.subr.mxu0 0.0
    %92 = vmatpush1.msra.mxu0 0.0
    %93 = vmatprep.subr.mxu0 0.0
    %94 = vmatpush1.msra.mxu0 0.0
    %95 = vmatprep.subr.mxu0 0.0
    %96 = vmatpush1.msra.mxu0 0.0
    %97 = vmatprep.subr.mxu0 0.0
    %98 = vmatpush1.msra.mxu0 0.0
    %99 = vmatprep.subr.mxu0 0.0
    %100 = vmatpush1.msra.mxu0 0.0
    %101 = vmatprep.subr.mxu0 0.0
    %102 = vmatpush1.msra.mxu0 0.0
    %103 = vmatprep.subr.mxu0 0.0
    %104 = vmatpush1.msra.mxu0 0.0
    %105 = vmatprep.subr.mxu0 0.0
    %106 = vmatpush1.msra.mxu0 0.0
    %107 = vmatprep.subr.mxu0 0.0
    %108 = vmatpush1.msra.mxu0 0.0
    %109 = vmatprep.subr.mxu0 0.0
    %110 = vmatpush1.msra.mxu0 0.0
    %111 = vmatprep.subr.mxu0 0.0
    %112 = vmatpush1.msra.mxu0 0.0
    %113 = vmatprep.subr.mxu0 0.0
    %114 = vmatpush1.msra.mxu0 0.0
    %115 = vmatprep.mubr.f32.mxu0 0.0
    %116 = vmatmul.mubr.f32.gmra.mrb[0].mxu0 %v34
    %v117 = vpop.f32.mrb[0].mxu0
    %v118 = vadd.f32 0.0, %v117
    %v119 = vpop.f32.mrb[0].mxu0
    %120 = vdwg.mxu0
    %v121 = vadd.f32 %v33, %v118
    %122 = vst [vmem:[#allocation2] sm:$0xff] %v121
    // Predicated region
    $region22: #{linear_forward.1} parent=1 // pred_check
      %p123 = pneg %p28
    $region23: #{linear_forward.1} parent=1 // pred_check_branch
      %125 = sbr.rel (%p123) target = $region25
    $region24: #{linear_forward.1} parent=1 // pred_region
      %v126 = vld [vmem:[#allocation2] sm:$0xff]
      %v127 = vld [vmem:[%s2] sm:$0x1]
      %v129 = vlaneseq
      %v130 = vshrl.u32 %v129, 7
      %v131 = vsub.s32 0, %v130
      %v132 = vrot.slane %v127, %v131
      %v134 = vadd.f32 %v126, %v132
      %135 = vst [vmem:[%s3] sm:$0xff] %v134
    $region25: #{linear_forward.1} parent=1 // pred_fallthru
      _
    // Predicated region
    $region26: #{linear_forward.1} parent=1 // pred_check
      _
    $region27: #{linear_forward.1} parent=1 // pred_check_branch
      %137 = sbr.rel (0) target = $region29
    $region28: #{linear_forward.1} parent=1 // pred_region
      _
    $region29: #{linear_forward.1} parent=1 // pred_fallthru
      _
    // Predicated region
    $region30: #{linear_forward.1} parent=1 // pred_check
      _
    $region31: #{linear_forward.1} parent=1 // pred_check_branch
      %139 = sbr.rel (0) target = $region33
    $region32: #{linear_forward.1} parent=1 // pred_region
      _
    $region33: #{linear_forward.1} parent=1 // pred_fallthru
      _
    %140 = vsyncpa [#allocation4], 1

</llo_original>
